<compile_context>
chip_gen: v7x
topology: tpu7x:2x2x1
jax: 0.10.0
libtpu: 0.0.40
codegen_flags: <defaults>
</compile_context>

<pallas_src>
import functools
import math

import jax
import jax.numpy as jnp
from jax import lax
from jax.experimental import pallas as pl
from jax.experimental.pallas import tpu as pltpu

# 48 MiB: above the default scoped limit on v5e/v6e (lets the bigger tiles pipeline),
# while leaving headroom within v7x's 64 MiB per-TC VMEM.
_VMEM_LIMIT = 48 * 1024 * 1024


# ---------------------------------------------------------------------------
# Kernel 1: fused QKV projection, emitting Q/K/V directly in (B, H, T, Dh).
# No bias (the torch heads have none), no intermediate fused-layout tensor.
# ---------------------------------------------------------------------------
def _qkv_kernel(x_ref, w_ref, q_ref, k_ref, v_ref):
    x = x_ref[0]                                            # (tm, E)
    q_ref[0, 0] = jnp.dot(x, w_ref[0, 0],
                          preferred_element_type=jnp.float32).astype(q_ref.dtype)
    k_ref[0, 0] = jnp.dot(x, w_ref[1, 0],
                          preferred_element_type=jnp.float32).astype(k_ref.dtype)
    v_ref[0, 0] = jnp.dot(x, w_ref[2, 0],
                          preferred_element_type=jnp.float32).astype(v_ref.dtype)


def _qkv_projection(x, wqkv, *, block_rows=512):
    """x: (B, T, E), wqkv: (3, H, E, Dh) -> q, k, v each (B, H, T, Dh)."""
    B, T, E = x.shape
    _, H, _, Dh = wqkv.shape
    tm = min(block_rows, T)
    # TODO(synk): add a padded / remainder-tile path for T not divisible by the tile.
    assert T % tm == 0, "sequence length must be divisible by the row tile"
    head_shape = jax.ShapeDtypeStruct((B, H, T, Dh), x.dtype)
    itemsize = x.dtype.itemsize
    flops = 2 * B * T * E * 3 * H * Dh
    bytes_acc = (x.size + wqkv.size * B * (T // tm) + 3 * B * H * T * Dh) * itemsize
    return pl.pallas_call(
        _qkv_kernel,
        out_shape=(head_shape, head_shape, head_shape),
        grid_spec=pltpu.PrefetchScalarGridSpec(
            num_scalar_prefetch=0,
            grid=(B, T // tm, H),
            in_specs=[
                # x row tile: constant across the innermost h axis -> DMA'd once per (b, i).
                pl.BlockSpec((1, tm, E), lambda b, i, h: (b, i, 0)),
                # per-head q/k/v weights (small blocks; nothing VMEM-resident at (K, N)).
                pl.BlockSpec((3, 1, E, Dh), lambda b, i, h: (0, h, 0, 0)),
            ],
            out_specs=[
                pl.BlockSpec((1, 1, tm, Dh), lambda b, i, h: (b, h, i, 0)),
                pl.BlockSpec((1, 1, tm, Dh), lambda b, i, h: (b, h, i, 0)),
                pl.BlockSpec((1, 1, tm, Dh), lambda b, i, h: (b, h, i, 0)),
            ],
        ),
        compiler_params=pltpu.CompilerParams(
            dimension_semantics=("parallel", "parallel", "arbitrary"),
            vmem_limit_bytes=_VMEM_LIMIT),
        cost_estimate=pl.CostEstimate(
            flops=flops, transcendentals=0, bytes_accessed=bytes_acc),
    )(x, wqkv)


# ---------------------------------------------------------------------------
# Kernel 2: causal flash attention. K/V for the whole head are VMEM-resident
# (re-DMA'd only when (b, h) changes); kv tiles are looped inside the kernel
# only up to the causal diagonal; the mask touches only the diagonal tile.
# ---------------------------------------------------------------------------
def _flash_attn_kernel(q_ref, k_ref, v_ref, o_ref, m_scr, l_scr, acc_scr,
                       *, scale, tq, tk):
    qi = pl.program_id(2)
    q = q_ref[0, 0]                                         # (tq, Dh)

    m_scr[...] = jnp.full_like(m_scr, -jnp.inf)
    l_scr[...] = jnp.zeros_like(l_scr)
    acc_scr[...] = jnp.zeros_like(acc_scr)

    def process(kv_idx, *, masked):
        start = pl.multiple_of(kv_idx * tk, tk)
        k_blk = k_ref[0, 0, pl.ds(start, tk), :]            # (tk, Dh) slice of resident K
        v_blk = v_ref[0, 0, pl.ds(start, tk), :]            # (tk, Dh) slice of resident V
        # q @ k^T without materializing a (Dh, tk) transpose: contract last dims.
        s = lax.dot_general(q, k_blk, (((1,), (1,)), ((), ())),
                            preferred_element_type=jnp.float32) * scale
        if masked:   # only the diagonal tile needs the causal mask (tq == tk)
            row = lax.broadcasted_iota(jnp.int32, (tq, tk), 0)
            col = lax.broadcasted_iota(jnp.int32, (tq, tk), 1)
            s = jnp.where(row >= col, s, -jnp.inf)
        m_prev = m_scr[...]
        m_new = jnp.maximum(m_prev, s.max(axis=-1, keepdims=True))
        alpha = jnp.exp(m_prev - m_new)
        p = jnp.exp(s - m_new)
        l_scr[...] = alpha * l_scr[...] + p.sum(axis=-1, keepdims=True)
        acc_scr[...] = alpha * acc_scr[...] + jnp.dot(
            p.astype(v_blk.dtype), v_blk, preferred_element_type=jnp.float32)
        m_scr[...] = m_new

    def _below_diag(kv_idx, carry):
        process(kv_idx, masked=False)
        return carry

    lax.fori_loop(0, qi, _below_diag, 0)    # strictly-below-diagonal tiles: unmasked
    process(qi, masked=True)                # diagonal tile: masked

    # Causal path always processes the diagonal tile, so l > 0 here. If the skip
    # logic is ever generalized (padding / windows), guard l against zero first.
    o_ref[0, 0] = (acc_scr[...] *
                   pl.reciprocal(l_scr[...], approx=True)).astype(o_ref.dtype)


def _flash_attention(q, k, v, *, block_q=512, block_k=512):
    """q, k, v: (B, H, T, Dh) -> causal attention output (B, H, T, Dh)."""
    B, H, T, Dh = q.shape
    tq = min(block_q, T)
    tk = min(block_k, T)
    assert T % tq == 0 and T % tk == 0, "seq len must divide the q/kv tiles"
    assert tq == tk, "equal q/kv tiles keep the causal diagonal handling simple"
    itemsize = q.dtype.itemsize
    # Whole-head K and V live in VMEM (double-buffered by the pipeline).
    # TODO(synk): for very long T, switch to a streamed K/V variant (kv grid axis).
    assert 2 * 2 * T * Dh * itemsize <= 24 * 1024 * 1024, \
        "whole-head K/V does not fit VMEM; use a streamed variant"
    scale = 1.0 / math.sqrt(Dh)
    nq = T // tq
    kernel = functools.partial(_flash_attn_kernel, scale=scale, tq=tq, tk=tk)
    flops = 2 * B * H * T * T * Dh          # (QK^T + PV) over the causal half
    bytes_acc = 4 * B * H * T * Dh * itemsize
    # TODO(synk): for Dh < 128, pack >=2 heads per grid step for lane-dense stores.
    return pl.pallas_call(
        kernel,
        out_shape=jax.ShapeDtypeStruct((B, H, T, Dh), q.dtype),
        grid_spec=pltpu.PrefetchScalarGridSpec(
            num_scalar_prefetch=0,
            grid=(B, H, nq),
            in_specs=[
                pl.BlockSpec((1, 1, tq, Dh), lambda b, h, i: (b, h, i, 0)),  # q tile
                pl.BlockSpec((1, 1, T, Dh), lambda b, h, i: (b, h, 0, 0)),   # K (resident)
                pl.BlockSpec((1, 1, T, Dh), lambda b, h, i: (b, h, 0, 0)),   # V (resident)
            ],
            out_specs=pl.BlockSpec((1, 1, tq, Dh), lambda b, h, i: (b, h, i, 0)),
            scratch_shapes=[
                pltpu.VMEM((tq, 1), jnp.float32),    # running max m
                pltpu.VMEM((tq, 1), jnp.float32),    # running denom l
                pltpu.VMEM((tq, Dh), jnp.float32),   # f32 accumulator
            ],
        ),
        compiler_params=pltpu.CompilerParams(
            dimension_semantics=("parallel", "parallel", "arbitrary"),
            vmem_limit_bytes=_VMEM_LIMIT),
        cost_estimate=pl.CostEstimate(
            flops=flops, transcendentals=B * H * T * T // 2, bytes_accessed=bytes_acc),
    )(q, k, v)


# ---------------------------------------------------------------------------
# Kernel 3: output projection + bias. Reads the per-head attention output
# directly (no concat/transpose) and reduces over heads into a resident f32
# accumulator; the final store is a lane-dense (tm, E) block.
# ---------------------------------------------------------------------------
def _proj_kernel(o_ref, w_ref, b_ref, out_ref, acc_ref):
    h = pl.program_id(2)

    @pl.when(h == 0)
    def _init():
        acc_ref[...] = jnp.zeros_like(acc_ref)

    acc_ref[...] += jnp.dot(o_ref[0, 0], w_ref[0],
                            preferred_element_type=jnp.float32)

    @pl.when(h == pl.num_programs(2) - 1)
    def _finalize():
        out_ref[0] = (acc_ref[...] + b_ref[...].astype(jnp.float32)).astype(out_ref.dtype)


def _head_projection(o, w_proj, b_proj, *, block_rows=512):
    """o: (B, H, T, Dh), w_proj: (H, Dh, E), b_proj: (E,) -> (B, T, E)."""
    B, H, T, Dh = o.shape
    E = w_proj.shape[-1]
    tm = min(block_rows, T)
    assert T % tm == 0, "sequence length must be divisible by the row tile"
    bias = b_proj.reshape(1, E)
    itemsize = o.dtype.itemsize
    flops = 2 * B * T * H * Dh * E
    bytes_acc = (o.size + w_proj.size * B * (T // tm) + B * T * E) * itemsize
    return pl.pallas_call(
        _proj_kernel,
        out_shape=jax.ShapeDtypeStruct((B, T, E), o.dtype),
        grid_spec=pltpu.PrefetchScalarGridSpec(
            num_scalar_prefetch=0,
            grid=(B, T // tm, H),
            in_specs=[
                pl.BlockSpec((1, 1, tm, Dh), lambda b, i, h: (b, h, i, 0)),  # per-head o
                pl.BlockSpec((1, Dh, E), lambda b, i, h: (h, 0, 0)),         # per-head W slab
                pl.BlockSpec((1, E), lambda b, i, h: (0, 0)),                # bias
            ],
            out_specs=pl.BlockSpec((1, tm, E), lambda b, i, h: (b, i, 0)),   # lane-dense
            scratch_shapes=[pltpu.VMEM((tm, E), jnp.float32)],
        ),
        compiler_params=pltpu.CompilerParams(
            dimension_semantics=("parallel", "parallel", "arbitrary"),
            vmem_limit_bytes=_VMEM_LIMIT),
        cost_estimate=pl.CostEstimate(
            flops=flops, transcendentals=0, bytes_accessed=bytes_acc),
    )(o, w_proj, bias)


# ---------------------------------------------------------------------------
# Full MultiHeadAttention forward.
# ---------------------------------------------------------------------------
def multi_head_attention(x, wqkv, w_proj, b_proj, *,
                         block_rows=512, block_q=512, block_k=512):
    """x: (B, T, E); wqkv: (3, H, E, Dh); w_proj: (H, Dh, E); b_proj: (E,)."""
    q, k, v = _qkv_projection(x, wqkv, block_rows=block_rows)
    o = _flash_attention(q, k, v, block_q=block_q, block_k=block_k)
    # Dropout: inference-mode identity (module.eval()).
    return _head_projection(o, w_proj, b_proj, block_rows=block_rows)


# ---------------------------------------------------------------------------
# Parameters (mirrors nn.Linear default init, kernel-friendly layouts).
# ---------------------------------------------------------------------------
def init_params(key, num_heads, head_size, embedding_dim, dtype=jnp.float32):
    E, H, Dh = embedding_dim, num_heads, head_size
    kq, kk, kv, kw, kb = jax.random.split(key, 5)
    bound_in = 1.0 / math.sqrt(E)
    bound_pr = 1.0 / math.sqrt(H * Dh)
    # (H, E, Dh) == per-head torch weights (Dh, E) transposed, stacked over heads.
    wq = jax.random.uniform(kq, (H, E, Dh), dtype, -bound_in, bound_in)
    wk = jax.random.uniform(kk, (H, E, Dh), dtype, -bound_in, bound_in)
    wv = jax.random.uniform(kv, (H, E, Dh), dtype, -bound_in, bound_in)
    wqkv = jnp.stack([wq, wk, wv], axis=0)                        # (3, H, E, Dh)
    # (H, Dh, E) == torch projection weight (E, H*Dh) transposed, split per head.
    w_proj = jax.random.uniform(kw, (H, Dh, E), dtype, -bound_pr, bound_pr)
    b_proj = jax.random.uniform(kb, (E,), dtype, -bound_pr, bound_pr)
    return wqkv, w_proj, b_proj


def multi_head_attention_ref(x, wqkv, w_proj, b_proj):
    """Pure-JAX reference (standard softmax) for correctness checking."""
    B, T, E = x.shape
    _, H, _, Dh = wqkv.shape
    q = jnp.einsum("bte,hed->bhtd", x, wqkv[0])
    k = jnp.einsum("bte,hed->bhtd", x, wqkv[1])
    v = jnp.einsum("bte,hed->bhtd", x, wqkv[2])
    s = jnp.einsum("bhqd,bhkd->bhqk", q, k) * (Dh ** -0.5)
    mask = jnp.tril(jnp.ones((T, T), bool))
    s = jnp.where(mask, s, -jnp.inf)
    p = jax.nn.softmax(s, axis=-1)
    o = jnp.einsum("bhqk,bhkd->bhqd", p, v)
    return jnp.einsum("bhtd,hde->bte", o, w_proj) + b_proj


if __name__ == "__main__":
    key = jax.random.PRNGKey(0)
    # batch=2, seq=8, embedding_dim=32, num_heads=4, head_size=8, dropout=0.1
    B, T, E = 2, 8, 32
    num_heads, head_size = 4, 8
    dropout_rate = 0.1          # identity at inference

    kx, kp = jax.random.split(key)
    x = jax.random.normal(kx, (B, T, E), jnp.float32)
    wqkv, w_proj, b_proj = init_params(kp, num_heads, head_size, E)

    out = multi_head_attention(x, wqkv, w_proj, b_proj)
    out = jax.block_until_ready(out)

    ref = multi_head_attention_ref(x, wqkv, w_proj, b_proj)
    assert out.shape == (B, T, E)
    # Tolerance covers the EUP approximate-reciprocal softmax normalization.
    assert jnp.allclose(out, ref, atol=2e-3, rtol=2e-3), "f32 mismatch vs reference"

    # bf16 end-to-end: feeds the MXU bf16 operands (f32 accumulation inside kernels).
    bf16 = jnp.bfloat16
    out_bf16 = multi_head_attention(x.astype(bf16), wqkv.astype(bf16),
                                    w_proj.astype(bf16), b_proj.astype(bf16))
    out_bf16 = jax.block_until_ready(out_bf16)
    assert out_bf16.shape == (B, T, E)
    assert jnp.allclose(out_bf16.astype(jnp.float32), ref, atol=1e-1, rtol=1e-1), \
        "bf16 mismatch vs reference"

    print("KERNEL_OK")
</pallas_src>

<mosaic_0001>
module attributes {stable_mosaic.version = 11 : i64} {
  func.func @_qkv_kernel(%arg0: i32, %arg1: i32, %arg2: i32, %arg3: memref<1x8x32xf32, #tpu.memory_space<vmem>>, %arg4: memref<3x1x32x8xf32, #tpu.memory_space<vmem>>, %arg5: memref<1x1x8x8xf32, #tpu.memory_space<vmem>>, %arg6: memref<1x1x8x8xf32, #tpu.memory_space<vmem>>, %arg7: memref<1x1x8x8xf32, #tpu.memory_space<vmem>>) attributes {dimension_semantics = [#tpu.dimension_semantics<parallel>, #tpu.dimension_semantics<parallel>, #tpu.dimension_semantics<arbitrary>], iteration_bounds = array<i64: 2, 1, 4>, scalar_prefetch = 0 : i64, scratch_operands = 0 : i64, tpu.core_type = #tpu.core_type<tc>, window_params = [{transform_indices = @transform_0, window_bounds = array<i64: 1, 8, 32>}, {transform_indices = @transform_1, window_bounds = array<i64: 3, 1, 32, 8>}, {transform_indices = @transform_2, window_bounds = array<i64: 1, 1, 8, 8>}, {transform_indices = @transform_3, window_bounds = array<i64: 1, 1, 8, 8>}, {transform_indices = @transform_4, window_bounds = array<i64: 1, 1, 8, 8>}]} {
    %c0 = arith.constant 0 : index
    %c0_0 = arith.constant 0 : index
    %c0_1 = arith.constant 0 : index
    %0 = vector.load %arg3[%c0, %c0_0, %c0_1] : memref<1x8x32xf32, #tpu.memory_space<vmem>>, vector<1x8x32xf32>
    %1 = vector.shape_cast %0 : vector<1x8x32xf32> to vector<8x32xf32>
    %c0_2 = arith.constant 0 : index
    %c0_3 = arith.constant 0 : index
    %c0_4 = arith.constant 0 : index
    %c0_5 = arith.constant 0 : index
    %2 = vector.load %arg4[%c0_2, %c0_3, %c0_4, %c0_5] : memref<3x1x32x8xf32, #tpu.memory_space<vmem>>, vector<1x1x32x8xf32>
    %3 = vector.shape_cast %2 : vector<1x1x32x8xf32> to vector<32x8xf32>
    %cst = arith.constant dense<0.000000e+00> : vector<8x8xf32>
    %4 = tpu.matmul %1, %3, %cst {dimension_numbers = #tpu.dot_dimension_numbers<[1], [0], [0], [1], [0, 0, 1, 1], [], []>} : vector<8x32xf32>, vector<32x8xf32>, vector<8x8xf32> -> vector<8x8xf32>
    %c0_6 = arith.constant 0 : index
    %c0_7 = arith.constant 0 : index
    %c0_8 = arith.constant 0 : index
    %c0_9 = arith.constant 0 : index
    %5 = vector.load %arg5[%c0_6, %c0_7, %c0_8, %c0_9] : memref<1x1x8x8xf32, #tpu.memory_space<vmem>>, vector<1x1x8x8xf32>
    %6 = vector.shape_cast %5 : vector<1x1x8x8xf32> to vector<8x8xf32>
    %7 = vector.shape_cast %4 : vector<8x8xf32> to vector<1x1x8x8xf32>
    tpu.vector_store %arg5[%c0_6, %c0_7, %c0_8, %c0_9], %7 {strides = array<i32>} : memref<1x1x8x8xf32, #tpu.memory_space<vmem>>, vector<1x1x8x8xf32>,
    %c1 = arith.constant 1 : index
    %c0_10 = arith.constant 0 : index
    %c0_11 = arith.constant 0 : index
    %c0_12 = arith.constant 0 : index
    %8 = vector.load %arg4[%c1, %c0_10, %c0_11, %c0_12] : memref<3x1x32x8xf32, #tpu.memory_space<vmem>>, vector<1x1x32x8xf32>
    %9 = vector.shape_cast %8 : vector<1x1x32x8xf32> to vector<32x8xf32>
    %cst_13 = arith.constant dense<0.000000e+00> : vector<8x8xf32>
    %10 = tpu.matmul %1, %9, %cst_13 {dimension_numbers = #tpu.dot_dimension_numbers<[1], [0], [0], [1], [0, 0, 1, 1], [], []>} : vector<8x32xf32>, vector<32x8xf32>, vector<8x8xf32> -> vector<8x8xf32>
    %c0_14 = arith.constant 0 : index
    %c0_15 = arith.constant 0 : index
    %c0_16 = arith.constant 0 : index
    %c0_17 = arith.constant 0 : index
    %11 = vector.load %arg6[%c0_14, %c0_15, %c0_16, %c0_17] : memref<1x1x8x8xf32, #tpu.memory_space<vmem>>, vector<1x1x8x8xf32>
    %12 = vector.shape_cast %11 : vector<1x1x8x8xf32> to vector<8x8xf32>
    %13 = vector.shape_cast %10 : vector<8x8xf32> to vector<1x1x8x8xf32>
    tpu.vector_store %arg6[%c0_14, %c0_15, %c0_16, %c0_17], %13 {strides = array<i32>} : memref<1x1x8x8xf32, #tpu.memory_space<vmem>>, vector<1x1x8x8xf32>,
    %c2 = arith.constant 2 : index
    %c0_18 = arith.constant 0 : index
    %c0_19 = arith.constant 0 : index
    %c0_20 = arith.constant 0 : index
    %14 = vector.load %arg4[%c2, %c0_18, %c0_19, %c0_20] : memref<3x1x32x8xf32, #tpu.memory_space<vmem>>, vector<1x1x32x8xf32>
    %15 = vector.shape_cast %14 : vector<1x1x32x8xf32> to vector<32x8xf32>
    %cst_21 = arith.constant dense<0.000000e+00> : vector<8x8xf32>
    %16 = tpu.matmul %1, %15, %cst_21 {dimension_numbers = #tpu.dot_dimension_numbers<[1], [0], [0], [1], [0, 0, 1, 1], [], []>} : vector<8x32xf32>, vector<32x8xf32>, vector<8x8xf32> -> vector<8x8xf32>
    %c0_22 = arith.constant 0 : index
    %c0_23 = arith.constant 0 : index
    %c0_24 = arith.constant 0 : index
    %c0_25 = arith.constant 0 : index
    %17 = vector.load %arg7[%c0_22, %c0_23, %c0_24, %c0_25] : memref<1x1x8x8xf32, #tpu.memory_space<vmem>>, vector<1x1x8x8xf32>
    %18 = vector.shape_cast %17 : vector<1x1x8x8xf32> to vector<8x8xf32>
    %19 = vector.shape_cast %16 : vector<8x8xf32> to vector<1x1x8x8xf32>
    tpu.vector_store %arg7[%c0_22, %c0_23, %c0_24, %c0_25], %19 {strides = array<i32>} : memref<1x1x8x8xf32, #tpu.memory_space<vmem>>, vector<1x1x8x8xf32>,
    return
  }
  func.func @transform_0(%arg0: i32, %arg1: i32, %arg2: i32) -> (i32, i32, i32) {
    %c0_i32 = arith.constant 0 : i32
    %c0_i32_0 = arith.constant 0 : i32
    return %arg0, %arg1, %c0_i32 : i32, i32, i32
  }
  func.func @transform_1(%arg0: i32, %arg1: i32, %arg2: i32) -> (i32, i32, i32, i32) {
    %c0_i32 = arith.constant 0 : i32
    %c0_i32_0 = arith.constant 0 : i32
    %c0_i32_1 = arith.constant 0 : i32
    %c0_i32_2 = arith.constant 0 : i32
    return %c0_i32, %arg2, %c0_i32_0, %c0_i32_1 : i32, i32, i32, i32
  }
  func.func @transform_2(%arg0: i32, %arg1: i32, %arg2: i32) -> (i32, i32, i32, i32) {
    %c0_i32 = arith.constant 0 : i32
    %c0_i32_0 = arith.constant 0 : i32
    return %arg0, %arg2, %arg1, %c0_i32 : i32, i32, i32, i32
  }
  func.func @transform_3(%arg0: i32, %arg1: i32, %arg2: i32) -> (i32, i32, i32, i32) {
    %c0_i32 = arith.constant 0 : i32
    %c0_i32_0 = arith.constant 0 : i32
    return %arg0, %arg2, %arg1, %c0_i32 : i32, i32, i32, i32
  }
  func.func @transform_4(%arg0: i32, %arg1: i32, %arg2: i32) -> (i32, i32, i32, i32) {
    %c0_i32 = arith.constant 0 : i32
    %c0_i32_0 = arith.constant 0 : i32
    return %arg0, %arg2, %arg1, %c0_i32 : i32, i32, i32, i32
  }
}

</mosaic_0001>

<llo_original>
// kernel: tpu_custom_call.1
$region0: #{tpu_custom_call.1}
  #allocation0 [shape = 'u32[]', space=smem, size = 0x4, offset = 0x4, fixed_abs, tag = 'smem constant byte address 0x4 - core index']
  #allocation1 [shape = 'u32[144,128]{1,0:T(1,128)}', space=vmem, size = 0x12000, scoped, tag = 'internal scratch']
  %s0 = inlined_call_operand.vmem [shape: f32[2,8,32], index: 0, kind: input, shape index: {}]
  %s1 = inlined_call_operand.vmem [shape: f32[3,4,32,8], index: 1, kind: input, shape index: {}]
  %s2 = inlined_call_operand.hbm [shape: f32[2,4,8,8], index: 2, kind: output, shape index: {0}]
  %s3 = inlined_call_operand.hbm [shape: f32[2,4,8,8], index: 3, kind: output, shape index: {1}]
  %s4 = inlined_call_operand.hbm [shape: f32[2,4,8,8], index: 4, kind: output, shape index: {2}]
  %5 = xla_tuple %s2, %s3, %s4
  %s6 = sld [smem:[#allocation0]]
  $region95: #{tpu_custom_call.1} parent=0
    _
  %s8 = ssub.s32 1, %s6
  %s9 = scalar_select 0, %s8, %s6
  $region1: #{tpu_custom_call.1} parent=0
    #allocation2 [shape = 'u8[98304]{0}', space=vmem, size = 0x18000, scoped, tag = 'input window, operand 1']
    #allocation3 [shape = 'u8[8192]{0}', space=vmem, size = 0x2000, scoped, tag = 'output window, operand 0']
    #allocation4 [shape = 's32[2]{0}', space=sflag, size = 0x8, scoped, tag = 'scoped memory for tpu_custom_call.1']
    #allocation5 [shape = 'u8[8192]{0}', space=vmem, size = 0x2000, scoped, tag = 'output window, operand 1']
    #allocation6 [shape = 's32[2]{0}', space=sflag, size = 0x8, scoped, tag = 'scoped memory for tpu_custom_call.1']
    #allocation7 [shape = 'u8[8192]{0}', space=vmem, size = 0x2000, scoped, tag = 'output window, operand 2']
    %10 = vsyncpa [#allocation4], 0
    %s11 = scalar_lea.sflag [#allocation4], 1
    %12 = vsyncpa %s11, 0
    %13 = vsyncpa [#allocation6], 0
    %s14 = scalar_lea.sflag [#allocation6], 1
    %15 = vsyncpa %s14, 0
    loop: start=0, step=1, limit=10
    $region2: #{tpu_custom_call.1} parent=1 // loop_pre_header
      _
    $region3: #{tpu_custom_call.1} parent=1 // loop_header
      %s17 = sphi 0, %s21
      %p18 = scmp.ge.s32.totalorder %s17, 10
      %s24 = sphi 0, %s43
      %s25 = sphi 0, %s39
      %s26 = sphi 0, %s35
      %s27 = sphi 0, %s24
      %s28 = sphi 0, %s25
      %s29 = sphi 0, %s26
      %s30 = sphi 0, %s27
      %s31 = sphi 0, %s28
      %s32 = sphi 0, %s29
      %s48 = sphi 0, %s50
      %s51 = sphi 0, %s48
      %s52 = sphi 0, %s51
      %s68 = sphi 0, %s52
      %s74 = sphi 0, %s76
      %s77 = sphi 0, %s74
      %s78 = sphi 0, %s77
      %s94 = sphi 0, %s78
      %s104 = sphi 0, %s106
      %s107 = sphi 0, %s104
      %s108 = sphi 0, %s107
      %s124 = sphi 0, %s108
      %s134 = sphi 0, %s136
      %s137 = sphi 0, %s134
      %s138 = sphi 0, %s137
      %s154 = sphi 0, %s138
      %s164 = sphi 0, %s166
      %s167 = sphi 0, %s164
      %s168 = sphi 0, %s167
      %s184 = sphi 0, %s168
    $region4: #{tpu_custom_call.1} parent=1 // loop_header_branch
      %20 = sbr.rel (%p18) target = $region8
    $region5: #{tpu_custom_call.1} parent=1 // loop_body
      %s22 = ssub.s32 %s17, 1
      %s23 = ssub.s32 %s17, 2
      %s33 = sadd.s32 1, %s26
      %p34 = scmp.ge.s32.totalorder %s33, 4
      %s35 = scalar_select %p34, 0, %s33
      %s36 = sadd.s32 1, %s25
      %s37 = scalar_select %p34, %s36, %s25
      %p38 = scmp.ge.s32.totalorder %s37, 1
      %s39 = scalar_select %p38, 0, %s37
      %s40 = sadd.s32 1, %s24
      %s41 = scalar_select %p38, %s40, %s24
      %p42 = scmp.ge.s32.totalorder %s41, 2
      %s43 = scalar_select %p42, 0, %s41
      %s44 = ssub.s32 %s24, %s43
      %s45 = ssub.s32 %s25, %s39
      %s46 = sor.u32 %s44, %s45
      %p47 = scmp.eq.s32.totalorder %s46, 0
      %s49 = sadd.s32 %s48, 1
      %s50 = scalar_select %p47, %s48, %s49
      %p53 = pneg %p47
      %p54 = scmp.eq.s32.totalorder %s17, 7
      %p55 = por %p53, %p54
      %p56 = scmp.ne.s32.totalorder %s48, %s51
      %p57 = scmp.eq.s32.totalorder %s17, 0
      %p58 = por %p56, %p57
      %p59 = scmp.ne.s32.totalorder %s48, %s51
      %p60 = scmp.eq.s32.totalorder %s22, 7
      %p61 = por %p59, %p60
      %p62 = scmp.ne.s32.totalorder %s51, %s52
      %p63 = scmp.eq.s32.totalorder %s22, 0
      %p64 = por %p62, %p63
      %p65 = scmp.ne.s32.totalorder %s51, %s52
      %p66 = scmp.eq.s32.totalorder %s23, 7
      %p67 = por %p65, %p66
      %p69 = scmp.ne.s32.totalorder %s52, %s68
      %p70 = scmp.eq.s32.totalorder %s23, 0
      %p71 = por %p69, %p70
      %s72 = ssub.s32 %s26, %s35
      %p73 = scmp.eq.s32.totalorder %s72, 0
      %s75 = sadd.s32 %s74, 1
      %s76 = scalar_select %p73, %s74, %s75
      %p79 = pneg %p73
      %p80 = scmp.eq.s32.totalorder %s17, 7
      %p81 = por %p79, %p80
      %p82 = scmp.ne.s32.totalorder %s74, %s77
      %p83 = scmp.eq.s32.totalorder %s17, 0
      %p84 = por %p82, %p83
      %p85 = scmp.ne.s32.totalorder %s74, %s77
      %p86 = scmp.eq.s32.totalorder %s22, 7
      %p87 = por %p85, %p86
      %p88 = scmp.ne.s32.totalorder %s77, %s78
      %p89 = scmp.eq.s32.totalorder %s22, 0
      %p90 = por %p88, %p89
      %p91 = scmp.ne.s32.totalorder %s77, %s78
      %p92 = scmp.eq.s32.totalorder %s23, 7
      %p93 = por %p91, %p92
      %p95 = scmp.ne.s32.totalorder %s78, %s94
      %p96 = scmp.eq.s32.totalorder %s23, 0
      %p97 = por %p95, %p96
      %s98 = ssub.s32 %s24, %s43
      %s99 = ssub.s32 %s26, %s35
      %s100 = sor.u32 %s98, %s99
      %s101 = ssub.s32 %s25, %s39
      %s102 = sor.u32 %s100, %s101
      %p103 = scmp.eq.s32.totalorder %s102, 0
      %s105 = sadd.s32 %s104, 1
      %s106 = scalar_select %p103, %s104, %s105
      %p109 = pneg %p103
      %p110 = scmp.eq.s32.totalorder %s17, 7
      %p111 = por %p109, %p110
      %p112 = scmp.ne.s32.totalorder %s104, %s107
      %p113 = scmp.eq.s32.totalorder %s17, 0
      %p114 = por %p112, %p113
      %p115 = scmp.ne.s32.totalorder %s104, %s107
      %p116 = scmp.eq.s32.totalorder %s22, 7
      %p117 = por %p115, %p116
      %p118 = scmp.ne.s32.totalorder %s107, %s108
      %p119 = scmp.eq.s32.totalorder %s22, 0
      %p120 = por %p118, %p119
      %p121 = scmp.ne.s32.totalorder %s107, %s108
      %p122 = scmp.eq.s32.totalorder %s23, 7
      %p123 = por %p121, %p122
      %p125 = scmp.ne.s32.totalorder %s108, %s124
      %p126 = scmp.eq.s32.totalorder %s23, 0
      %p127 = por %p125, %p126
      %s128 = ssub.s32 %s24, %s43
      %s129 = ssub.s32 %s26, %s35
      %s130 = sor.u32 %s128, %s129
      %s131 = ssub.s32 %s25, %s39
      %s132 = sor.u32 %s130, %s131
      %p133 = scmp.eq.s32.totalorder %s132, 0
      %s135 = sadd.s32 %s134, 1
      %s136 = scalar_select %p133, %s134, %s135
      %p139 = pneg %p133
      %p140 = scmp.eq.s32.totalorder %s17, 7
      %p141 = por %p139, %p140
      %p142 = scmp.ne.s32.totalorder %s134, %s137
      %p143 = scmp.eq.s32.totalorder %s17, 0
      %p144 = por %p142, %p143
      %p145 = scmp.ne.s32.totalorder %s134, %s137
      %p146 = scmp.eq.s32.totalorder %s22, 7
      %p147 = por %p145, %p146
      %p148 = scmp.ne.s32.totalorder %s137, %s138
      %p149 = scmp.eq.s32.totalorder %s22, 0
      %p150 = por %p148, %p149
      %p151 = scmp.ne.s32.totalorder %s137, %s138
      %p152 = scmp.eq.s32.totalorder %s23, 7
      %p153 = por %p151, %p152
      %p155 = scmp.ne.s32.totalorder %s138, %s154
      %p156 = scmp.eq.s32.totalorder %s23, 0
      %p157 = por %p155, %p156
      %s158 = ssub.s32 %s24, %s43
      %s159 = ssub.s32 %s26, %s35
      %s160 = sor.u32 %s158, %s159
      %s161 = ssub.s32 %s25, %s39
      %s162 = sor.u32 %s160, %s161
      %p163 = scmp.eq.s32.totalorder %s162, 0
      %s165 = sadd.s32 %s164, 1
      %s166 = scalar_select %p163, %s164, %s165
      %p169 = pneg %p163
      %p170 = scmp.eq.s32.totalorder %s17, 7
      %p171 = por %p169, %p170
      %p172 = scmp.ne.s32.totalorder %s164, %s167
      %p173 = scmp.eq.s32.totalorder %s17, 0
      %p174 = por %p172, %p173
      %p175 = scmp.ne.s32.totalorder %s164, %s167
      %p176 = scmp.eq.s32.totalorder %s22, 7
      %p177 = por %p175, %p176
      %p178 = scmp.ne.s32.totalorder %s167, %s168
      %p179 = scmp.eq.s32.totalorder %s22, 0
      %p180 = por %p178, %p179
      %p181 = scmp.ne.s32.totalorder %s167, %s168
      %p182 = scmp.eq.s32.totalorder %s23, 7
      %p183 = por %p181, %p182
      %p185 = scmp.ne.s32.totalorder %s168, %s184
      %p186 = scmp.eq.s32.totalorder %s23, 0
      %p187 = por %p185, %p186
      %p188 = scmp.le.s32.totalorder 1, %s17
      %p189 = scmp.lt.s32.totalorder %s17, 9
      %p190 = pnand %p188, %p189
      %p191 = pneg %p190
      // Predicated region
      $region9: #{tpu_custom_call.1} parent=5 // pred_check
        _
      $region10: #{tpu_custom_call.1} parent=5 // pred_check_branch
        %193 = sbr.rel (%p190) target = $region12
      $region11: #{tpu_custom_call.1} parent=5 // pred_region
        %s194 = ssub.s32 %s17, 1
      $region12: #{tpu_custom_call.1} parent=5 // pred_fallthru
        _
      %p195 = scmp.lt.s32.totalorder %s17, 8
      // Predicated region
      $region13: #{tpu_custom_call.1} parent=5 // pred_check
        %p196 = pneg %p195
      $region14: #{tpu_custom_call.1} parent=5 // pred_check_branch
        %198 = sbr.rel (%p196) target = $region16
      $region15: #{tpu_custom_call.1} parent=5 // pred_region
        // Predicated region
        $region17: #{tpu_custom_call.1} parent=15 // pred_check
          %p199 = pneg %p58
        $region18: #{tpu_custom_call.1} parent=15 // pred_check_branch
          %201 = sbr.rel (%p199) target = $region20
        $region19: #{tpu_custom_call.1} parent=15 // pred_region
          %p202 = scmp.lt.s32.totalorder %s24, 1
          %s203 = scalar_select %p202, %s24, 1
          %p204 = scmp.lt.s32.totalorder %s25, 0
          %s205 = scalar_select %p204, %s25, 0
          %s206 = sadd.s32 %s205, %s203
          %s207 = smul.addr %s206, 8
          %s208 = scalar_lea.vmem %s0, %s207
        $region20: #{tpu_custom_call.1} parent=15 // pred_fallthru
          _
        // Predicated region
        $region21: #{tpu_custom_call.1} parent=15 // pred_check
          %p209 = pneg %p84
        $region22: #{tpu_custom_call.1} parent=15 // pred_check_branch
          %211 = sbr.rel (%p209) target = $region24
        $region23: #{tpu_custom_call.1} parent=15 // pred_region
          %s212 = sand.u32 %s74, 1
          %s213 = sand.u32 %s74, 1
          %s214 = smul.addr %s213, 96
          %s215 = scalar_lea.vmem [#allocation2], %s214
          %s216 = smul.addr %s26, 4
          %s217 = smul.addr %s216, 8
          %s218 = scalar_lea.vmem %s1, %s217
          // Predicated region
          $region25: #{tpu_custom_call.1} parent=23 // pred_check
            _
          $region26: #{tpu_custom_call.1} parent=23 // pred_check_branch
            %220 = sbr.rel (0) target = $region28
          $region27: #{tpu_custom_call.1} parent=23 // pred_region
            // Predicated region
            $region29: #{tpu_custom_call.1} parent=27 // pred_check
              _
            $region30: #{tpu_custom_call.1} parent=27 // pred_check_branch
              %222 = sbr.rel (0) target = $region32
            $region31: #{tpu_custom_call.1} parent=27 // pred_region
              // Predicated region
              $region44: #{tpu_custom_call.1} parent=31 // pred_check
                _
              $region45: #{tpu_custom_call.1} parent=31 // pred_check_branch
                %259 = sbr.rel (0) target = $region47
              $region46: #{tpu_custom_call.1} parent=31 // pred_region
                loop: start=0, step=1, limit=1
                $region48: #{tpu_custom_call.1} parent=46 // loop_pre_header
                  _
                $region49: #{tpu_custom_call.1} parent=46 // loop_header
                  %s261 = sphi 0, %s265
                  %p262 = scmp.ge.s32.totalorder %s261, 1
                  %s266 = sphi %s218, %s218
                  %s267 = sphi %s215, %s215
                $region50: #{tpu_custom_call.1} parent=46 // loop_header_branch
                  %264 = sbr.rel (%p262) target = $region54
                $region51: #{tpu_custom_call.1} parent=46 // loop_body
                  %v268 = vld [vmem:[%s266] sm:$0xff]
                  %269 = vst [vmem:[%s267] sm:$0xff] %v268
                  %v270 = vld [vmem:[%s266 + $0x8] sm:$0xff]
                  %271 = vst [vmem:[%s267 + $0x8] sm:$0xff] %v270
                  %v272 = vld [vmem:[%s266 + $0x10] sm:$0xff]
                  %273 = vst [vmem:[%s267 + $0x10] sm:$0xff] %v272
                  %v274 = vld [vmem:[%s266 + $0x18] sm:$0xff]
                  %275 = vst [vmem:[%s267 + $0x18] sm:$0xff] %v274
                  %v276 = vld [vmem:[%s266 + $0x80] sm:$0xff]
                  %277 = vst [vmem:[%s267 + $0x20] sm:$0xff] %v276
                  %v278 = vld [vmem:[%s266 + $0x88] sm:$0xff]
                  %279 = vst [vmem:[%s267 + $0x28] sm:$0xff] %v278
                  %v280 = vld [vmem:[%s266 + $0x90] sm:$0xff]
                  %281 = vst [vmem:[%s267 + $0x30] sm:$0xff] %v280
                  %v282 = vld [vmem:[%s266 + $0x98] sm:$0xff]
                  %283 = vst [vmem:[%s267 + $0x38] sm:$0xff] %v282
                  %v284 = vld [vmem:[%s266 + $0x100] sm:$0xff]
                  %285 = vst [vmem:[%s267 + $0x40] sm:$0xff] %v284
                  %v286 = vld [vmem:[%s266 + $0x108] sm:$0xff]
                  %287 = vst [vmem:[%s267 + $0x48] sm:$0xff] %v286
                  %v288 = vld [vmem:[%s266 + $0x110] sm:$0xff]
                  %289 = vst [vmem:[%s267 + $0x50] sm:$0xff] %v288
                  %v290 = vld [vmem:[%s266 + $0x118] sm:$0xff]
                  %291 = vst [vmem:[%s267 + $0x58] sm:$0xff] %v290
                $region52: #{tpu_custom_call.1} parent=46 // loop_footer
                  %s265 = sadd.s32 1, %s261
                $region53: #{tpu_custom_call.1} parent=46 // loop_footer_branch
                  %260 = sbr.rel target = $region49
                $region54: #{tpu_custom_call.1} parent=46 // loop_exit
                  _
              $region47: #{tpu_custom_call.1} parent=31 // pred_fallthru
                _
              // Predicated region
              $region55: #{tpu_custom_call.1} parent=31 // pred_check
                _
              $region56: #{tpu_custom_call.1} parent=31 // pred_check_branch
                %293 = sbr.rel target = $region58
              $region57: #{tpu_custom_call.1} parent=31 // pred_region
                _
              $region58: #{tpu_custom_call.1} parent=31 // pred_fallthru
                _
            $region32: #{tpu_custom_call.1} parent=27 // pred_fallthru
              _
            // Predicated region
            $region33: #{tpu_custom_call.1} parent=27 // pred_check
              _
            $region34: #{tpu_custom_call.1} parent=27 // pred_check_branch
              %224 = sbr.rel target = $region36
            $region35: #{tpu_custom_call.1} parent=27 // pred_region
              loop: start=0, step=1, limit=1
              $region37: #{tpu_custom_call.1} parent=35 // loop_pre_header
                _
              $region38: #{tpu_custom_call.1} parent=35 // loop_header
                %s227 = sphi 0, %s231
                %p228 = scmp.ge.s32.totalorder %s227, 1
                %s232 = sphi %s218, %s218
                %s233 = sphi %s215, %s215
              $region39: #{tpu_custom_call.1} parent=35 // loop_header_branch
                %230 = sbr.rel (%p228) target = $region43
              $region40: #{tpu_custom_call.1} parent=35 // loop_body
                %v234 = vld [vmem:[%s232] sm:$0xff]
                %235 = vst [vmem:[%s233] sm:$0xff] %v234
                %v236 = vld [vmem:[%s232 + $0x8] sm:$0xff]
                %237 = vst [vmem:[%s233 + $0x8] sm:$0xff] %v236
                %v238 = vld [vmem:[%s232 + $0x10] sm:$0xff]
                %239 = vst [vmem:[%s233 + $0x10] sm:$0xff] %v238
                %v240 = vld [vmem:[%s232 + $0x18] sm:$0xff]
                %241 = vst [vmem:[%s233 + $0x18] sm:$0xff] %v240
                %v242 = vld [vmem:[%s232 + $0x80] sm:$0xff]
                %243 = vst [vmem:[%s233 + $0x20] sm:$0xff] %v242
                %v244 = vld [vmem:[%s232 + $0x88] sm:$0xff]
                %245 = vst [vmem:[%s233 + $0x28] sm:$0xff] %v244
                %v246 = vld [vmem:[%s232 + $0x90] sm:$0xff]
                %247 = vst [vmem:[%s233 + $0x30] sm:$0xff] %v246
                %v248 = vld [vmem:[%s232 + $0x98] sm:$0xff]
                %249 = vst [vmem:[%s233 + $0x38] sm:$0xff] %v248
                %v250 = vld [vmem:[%s232 + $0x100] sm:$0xff]
                %251 = vst [vmem:[%s233 + $0x40] sm:$0xff] %v250
                %v252 = vld [vmem:[%s232 + $0x108] sm:$0xff]
                %253 = vst [vmem:[%s233 + $0x48] sm:$0xff] %v252
                %v254 = vld [vmem:[%s232 + $0x110] sm:$0xff]
                %255 = vst [vmem:[%s233 + $0x50] sm:$0xff] %v254
                %v256 = vld [vmem:[%s232 + $0x118] sm:$0xff]
                %257 = vst [vmem:[%s233 + $0x58] sm:$0xff] %v256
              $region41: #{tpu_custom_call.1} parent=35 // loop_footer
                %s231 = sadd.s32 1, %s227
              $region42: #{tpu_custom_call.1} parent=35 // loop_footer_branch
                %226 = sbr.rel target = $region38
              $region43: #{tpu_custom_call.1} parent=35 // loop_exit
                _
            $region36: #{tpu_custom_call.1} parent=27 // pred_fallthru
              _
          $region28: #{tpu_custom_call.1} parent=23 // pred_fallthru
            _
          %294 = vnop
        $region24: #{tpu_custom_call.1} parent=15 // pred_fallthru
          _
      $region16: #{tpu_custom_call.1} parent=5 // pred_fallthru
        _
      %p295 = scmp.le.s32.totalorder 1, %s17
      %p296 = scmp.lt.s32.totalorder %s17, 9
      %p297 = pnand %p295, %p296
      %p298 = pneg %p297
      // Predicated region
      $region59: #{tpu_custom_call.1} parent=5 // pred_check
        _
      $region60: #{tpu_custom_call.1} parent=5 // pred_check_branch
        %300 = sbr.rel (%p297) target = $region62
      $region61: #{tpu_custom_call.1} parent=5 // pred_region
        %s301 = ssub.s32 %s17, 1
        %s302 = sand.u32 %s77, 1
        %s303 = sand.u32 %s77, 1
        %s304 = smul.addr %s303, 96
        %s305 = scalar_lea.vmem [#allocation2], %s304
        // Predicated region
        $region63: #{tpu_custom_call.1} parent=61 // pred_check
          %p306 = pneg %p90
        $region64: #{tpu_custom_call.1} parent=61 // pred_check_branch
          %308 = sbr.rel (%p306) target = $region66
        $region65: #{tpu_custom_call.1} parent=61 // pred_region
          _
        $region66: #{tpu_custom_call.1} parent=61 // pred_fallthru
          _
        %p309 = scmp.lt.s32.totalorder %s27, 1
        %s310 = scalar_select %p309, %s27, 1
        %p311 = scmp.lt.s32.totalorder %s28, 0
        %s312 = scalar_select %p311, %s28, 0
        %s313 = sadd.s32 %s312, %s310
        %s314 = smul.addr %s313, 8
        %s315 = scalar_lea.vmem %s0, %s314
        %p316 = pneg %p64
        %p317 = pneg %p61
        %s318 = sand.u32 %s77, 1
        %s319 = sand.u32 %s77, 1
        %s320 = smul.addr %s319, 96
        %s321 = scalar_lea.vmem [#allocation2], %s320
        %p322 = pneg %p90
        %p323 = pneg %p87
        %p324 = pneg %p120
        %p325 = pneg %p117
        %s326 = sand.u32 %s107, 1
        %s327 = scalar_lea.sflag [#allocation4], %s326
        %s328 = sand.u32 %s107, 1
        %s329 = smul.addr %s328, 8
        %s330 = scalar_lea.vmem [#allocation3], %s329
        %p331 = pneg %p150
        %p332 = pneg %p147
        %s333 = sand.u32 %s22, 1
        %s334 = scalar_lea.sflag [#allocation6], %s333
        %s335 = sand.u32 %s137, 1
        %s336 = smul.addr %s335, 8
        %s337 = scalar_lea.vmem [#allocation5], %s336
        %p338 = pneg %p180
        %p339 = pneg %p177
        %s340 = sand.u32 %s22, 1
        %s341 = scalar_lea.sflag [#allocation6], %s340
        %s342 = sand.u32 %s167, 1
        %s343 = smul.addr %s342, 8
        %s344 = scalar_lea.vmem [#allocation7], %s343
        %p345 = scmp.lt.s32.totalorder %s27, 1
        %s346 = scalar_select %p345, %s27, 1
        %p347 = scmp.lt.s32.totalorder %s28, 0
        %s348 = scalar_select %p347, %s28, 0
        %s349 = sadd.s32 %s348, %s346
        %s350 = smul.addr %s349, 8
        %s351 = scalar_lea.vmem %s0, %s350
        %v352 = vld [vmem:[%s351] sm:$0xff]
        %v353 = vld [vmem:[%s305] sm:$0xff]
        %v354 = vld [vmem:[%s305 + $0x8] sm:$0xff]
        %v355 = vld [vmem:[%s305 + $0x10] sm:$0xff]
        %v356 = vld [vmem:[%s305 + $0x18] sm:$0xff]
        %vm357 = vcmask 261120
        %v359 = vsel %vm357, %v352, 0
        %361 = vmatprep.subr.mxu0 0.0
        %362 = vmatpush1.msra.mxu0 %v353
        %363 = vmatprep.subr.mxu0 0.0
        %364 = vmatpush1.msra.mxu0 %v354
        %365 = vmatprep.subr.mxu0 0.0
        %366 = vmatpush1.msra.mxu0 %v355
        %367 = vmatprep.subr.mxu0 0.0
        %368 = vmatpush1.msra.mxu0 %v356
        %369 = vmatprep.subr.mxu0 0.0
        %370 = vmatpush1.msra.mxu0 0.0
        %371 = vmatprep.subr.mxu0 0.0
        %372 = vmatpush1.msra.mxu0 0.0
        %373 = vmatprep.subr.mxu0 0.0
        %374 = vmatpush1.msra.mxu0 0.0
        %375 = vmatprep.subr.mxu0 0.0
        %376 = vmatpush1.msra.mxu0 0.0
        %377 = vmatprep.subr.mxu0 0.0
        %378 = vmatpush1.msra.mxu0 0.0
        %379 = vmatprep.subr.mxu0 0.0
        %380 = vmatpush1.msra.mxu0 0.0
        %381 = vmatprep.subr.mxu0 0.0
        %382 = vmatpush1.msra.mxu0 0.0
        %383 = vmatprep.subr.mxu0 0.0
        %384 = vmatpush1.msra.mxu0 0.0
        %385 = vmatprep.subr.mxu0 0.0
        %386 = vmatpush1.msra.mxu0 0.0
        %387 = vmatprep.subr.mxu0 0.0
        %388 = vmatpush1.msra.mxu0 0.0
        %389 = vmatprep.subr.mxu0 0.0
        %390 = vmatpush1.msra.mxu0 0.0
        %391 = vmatprep.subr.mxu0 0.0
        %392 = vmatpush1.msra.mxu0 0.0
        %393 = vmatprep.subr.mxu0 0.0
        %394 = vmatpush1.msra.mxu0 0.0
        %395 = vmatprep.subr.mxu0 0.0
        %396 = vmatpush1.msra.mxu0 0.0
        %397 = vmatprep.subr.mxu0 0.0
        %398 = vmatpush1.msra.mxu0 0.0
        %399 = vmatprep.subr.mxu0 0.0
        %400 = vmatpush1.msra.mxu0 0.0
        %401 = vmatprep.subr.mxu0 0.0
        %402 = vmatpush1.msra.mxu0 0.0
        %403 = vmatprep.subr.mxu0 0.0
        %404 = vmatpush1.msra.mxu0 0.0
        %405 = vmatprep.subr.mxu0 0.0
        %406 = vmatpush1.msra.mxu0 0.0
        %407 = vmatprep.subr.mxu0 0.0
        %408 = vmatpush1.msra.mxu0 0.0
        %409 = vmatprep.subr.mxu0 0.0
        %410 = vmatpush1.msra.mxu0 0.0
        %411 = vmatprep.subr.mxu0 0.0
        %412 = vmatpush1.msra.mxu0 0.0
        %413 = vmatprep.subr.mxu0 0.0
        %414 = vmatpush1.msra.mxu0 0.0
        %415 = vmatprep.subr.mxu0 0.0
        %416 = vmatpush1.msra.mxu0 0.0
        %417 = vmatprep.subr.mxu0 0.0
        %418 = vmatpush1.msra.mxu0 0.0
        %419 = vmatprep.subr.mxu0 0.0
        %420 = vmatpush1.msra.mxu0 0.0
        %421 = vmatprep.subr.mxu0 0.0
        %422 = vmatpush1.msra.mxu0 0.0
        %423 = vmatprep.subr.mxu0 0.0
        %424 = vmatpush1.msra.mxu0 0.0
        %425 = vmatprep.mubr.f32.mxu0 0.0
        %426 = vmatmul.mubr.f32.gmra.mrb[0].mxu0 %v359
        %v427 = vpop.f32.mrb[0].mxu0
        %v428 = vadd.f32 0.0, %v427
        %v429 = vpop.f32.mrb[0].mxu0
        %430 = vdwg.mxu0
        %vm431 = vcmask 64512
        %432 = vst.msk [vmem:[%s330] sm:$0xff] %vm431, %v428
        %s433 = scalar_lea.vmem %s305, 32 [#allocation2]
        %v434 = vld [vmem:[%s433] sm:$0xff]
        %v435 = vld [vmem:[%s433 + $0x8] sm:$0xff]
        %v436 = vld [vmem:[%s433 + $0x10] sm:$0xff]
        %v437 = vld [vmem:[%s433 + $0x18] sm:$0xff]
        %438 = vmatprep.subr.mxu0 0.0
        %439 = vmatpush1.msra.mxu0 %v434
        %440 = vmatprep.subr.mxu0 0.0
        %441 = vmatpush1.msra.mxu0 %v435
        %442 = vmatprep.subr.mxu0 0.0
        %443 = vmatpush1.msra.mxu0 %v436
        %444 = vmatprep.subr.mxu0 0.0
        %445 = vmatpush1.msra.mxu0 %v437
        %446 = vmatprep.subr.mxu0 0.0
        %447 = vmatpush1.msra.mxu0 0.0
        %448 = vmatprep.subr.mxu0 0.0
        %449 = vmatpush1.msra.mxu0 0.0
        %450 = vmatprep.subr.mxu0 0.0
        %451 = vmatpush1.msra.mxu0 0.0
        %452 = vmatprep.subr.mxu0 0.0
        %453 = vmatpush1.msra.mxu0 0.0
        %454 = vmatprep.subr.mxu0 0.0
        %455 = vmatpush1.msra.mxu0 0.0
        %456 = vmatprep.subr.mxu0 0.0
        %457 = vmatpush1.msra.mxu0 0.0
        %458 = vmatprep.subr.mxu0 0.0
        %459 = vmatpush1.msra.mxu0 0.0
        %460 = vmatprep.subr.mxu0 0.0
        %461 = vmatpush1.msra.mxu0 0.0
        %462 = vmatprep.subr.mxu0 0.0
        %463 = vmatpush1.msra.mxu0 0.0
        %464 = vmatprep.subr.mxu0 0.0
        %465 = vmatpush1.msra.mxu0 0.0
        %466 = vmatprep.subr.mxu0 0.0
        %467 = vmatpush1.msra.mxu0 0.0
        %468 = vmatprep.subr.mxu0 0.0
        %469 = vmatpush1.msra.mxu0 0.0
        %470 = vmatprep.subr.mxu0 0.0
        %471 = vmatpush1.msra.mxu0 0.0
        %472 = vmatprep.subr.mxu0 0.0
        %473 = vmatpush1.msra.mxu0 0.0
        %474 = vmatprep.subr.mxu0 0.0
        %475 = vmatpush1.msra.mxu0 0.0
        %476 = vmatprep.subr.mxu0 0.0
        %477 = vmatpush1.msra.mxu0 0.0
        %478 = vmatprep.subr.mxu0 0.0
        %479 = vmatpush1.msra.mxu0 0.0
        %480 = vmatprep.subr.mxu0 0.0
        %481 = vmatpush1.msra.mxu0 0.0
        %482 = vmatprep.subr.mxu0 0.0
        %483 = vmatpush1.msra.mxu0 0.0
        %484 = vmatprep.subr.mxu0 0.0
        %485 = vmatpush1.msra.mxu0 0.0
        %486 = vmatprep.subr.mxu0 0.0
        %487 = vmatpush1.msra.mxu0 0.0
        %488 = vmatprep.subr.mxu0 0.0
        %489 = vmatpush1.msra.mxu0 0.0
        %490 = vmatprep.subr.mxu0 0.0
        %491 = vmatpush1.msra.mxu0 0.0
        %492 = vmatprep.subr.mxu0 0.0
        %493 = vmatpush1.msra.mxu0 0.0
        %494 = vmatprep.subr.mxu0 0.0
        %495 = vmatpush1.msra.mxu0 0.0
        %496 = vmatprep.subr.mxu0 0.0
        %497 = vmatpush1.msra.mxu0 0.0
        %498 = vmatprep.subr.mxu0 0.0
        %499 = vmatpush1.msra.mxu0 0.0
        %500 = vmatprep.subr.mxu0 0.0
        %501 = vmatpush1.msra.mxu0 0.0
        %502 = vmatprep.mubr.f32.mxu0 0.0
        %503 = vmatmul.mubr.f32.gmra.mrb[0].mxu0 %v359
        %v504 = vpop.f32.mrb[0].mxu0
        %v505 = vadd.f32 0.0, %v504
        %v506 = vpop.f32.mrb[0].mxu0
        %507 = vdwg.mxu0
        %508 = vst.msk [vmem:[%s337] sm:$0xff] %vm431, %v505
        %s509 = scalar_lea.vmem %s305, 64 [#allocation2]
        %v510 = vld [vmem:[%s509] sm:$0xff]
        %v511 = vld [vmem:[%s509 + $0x8] sm:$0xff]
        %v512 = vld [vmem:[%s509 + $0x10] sm:$0xff]
        %v513 = vld [vmem:[%s509 + $0x18] sm:$0xff]
        %514 = vmatprep.subr.mxu0 0.0
        %515 = vmatpush1.msra.mxu0 %v510
        %516 = vmatprep.subr.mxu0 0.0
        %517 = vmatpush1.msra.mxu0 %v511
        %518 = vmatprep.subr.mxu0 0.0
        %519 = vmatpush1.msra.mxu0 %v512
        %520 = vmatprep.subr.mxu0 0.0
        %521 = vmatpush1.msra.mxu0 %v513
        %522 = vmatprep.subr.mxu0 0.0
        %523 = vmatpush1.msra.mxu0 0.0
        %524 = vmatprep.subr.mxu0 0.0
        %525 = vmatpush1.msra.mxu0 0.0
        %526 = vmatprep.subr.mxu0 0.0
        %527 = vmatpush1.msra.mxu0 0.0
        %528 = vmatprep.subr.mxu0 0.0
        %529 = vmatpush1.msra.mxu0 0.0
        %530 = vmatprep.subr.mxu0 0.0
        %531 = vmatpush1.msra.mxu0 0.0
        %532 = vmatprep.subr.mxu0 0.0
        %533 = vmatpush1.msra.mxu0 0.0
        %534 = vmatprep.subr.mxu0 0.0
        %535 = vmatpush1.msra.mxu0 0.0
        %536 = vmatprep.subr.mxu0 0.0
        %537 = vmatpush1.msra.mxu0 0.0
        %538 = vmatprep.subr.mxu0 0.0
        %539 = vmatpush1.msra.mxu0 0.0
        %540 = vmatprep.subr.mxu0 0.0
        %541 = vmatpush1.msra.mxu0 0.0
        %542 = vmatprep.subr.mxu0 0.0
        %543 = vmatpush1.msra.mxu0 0.0
        %544 = vmatprep.subr.mxu0 0.0
        %545 = vmatpush1.msra.mxu0 0.0
        %546 = vmatprep.subr.mxu0 0.0
        %547 = vmatpush1.msra.mxu0 0.0
        %548 = vmatprep.subr.mxu0 0.0
        %549 = vmatpush1.msra.mxu0 0.0
        %550 = vmatprep.subr.mxu0 0.0
        %551 = vmatpush1.msra.mxu0 0.0
        %552 = vmatprep.subr.mxu0 0.0
        %553 = vmatpush1.msra.mxu0 0.0
        %554 = vmatprep.subr.mxu0 0.0
        %555 = vmatpush1.msra.mxu0 0.0
        %556 = vmatprep.subr.mxu0 0.0
        %557 = vmatpush1.msra.mxu0 0.0
        %558 = vmatprep.subr.mxu0 0.0
        %559 = vmatpush1.msra.mxu0 0.0
        %560 = vmatprep.subr.mxu0 0.0
        %561 = vmatpush1.msra.mxu0 0.0
        %562 = vmatprep.subr.mxu0 0.0
        %563 = vmatpush1.msra.mxu0 0.0
        %564 = vmatprep.subr.mxu0 0.0
        %565 = vmatpush1.msra.mxu0 0.0
        %566 = vmatprep.subr.mxu0 0.0
        %567 = vmatpush1.msra.mxu0 0.0
        %568 = vmatprep.subr.mxu0 0.0
        %569 = vmatpush1.msra.mxu0 0.0
        %570 = vmatprep.subr.mxu0 0.0
        %571 = vmatpush1.msra.mxu0 0.0
        %572 = vmatprep.subr.mxu0 0.0
        %573 = vmatpush1.msra.mxu0 0.0
        %574 = vmatprep.subr.mxu0 0.0
        %575 = vmatpush1.msra.mxu0 0.0
        %576 = vmatprep.subr.mxu0 0.0
        %577 = vmatpush1.msra.mxu0 0.0
        %578 = vmatprep.mubr.f32.mxu0 0.0
        %579 = vmatmul.mubr.f32.gmra.mrb[0].mxu0 %v359
        %v580 = vpop.f32.mrb[0].mxu0
        %v581 = vadd.f32 0.0, %v580
        %v582 = vpop.f32.mrb[0].mxu0
        %583 = vdwg.mxu0
        %584 = vst.msk [vmem:[%s344] sm:$0xff] %vm431, %v581
        %s585 = sand.u32 %s107, 1
        %s586 = scalar_lea.sflag [#allocation4], %s585
        %s587 = sand.u32 %s107, 1
        %s588 = smul.addr %s587, 8
        %s589 = scalar_lea.vmem [#allocation3], %s588
        %s590 = sand.u32 %s22, 1
        %s591 = scalar_lea.sflag [#allocation6], %s590
        %s592 = sand.u32 %s137, 1
        %s593 = smul.addr %s592, 8
        %s594 = scalar_lea.vmem [#allocation5], %s593
        %s595 = sand.u32 %s22, 1
        %s596 = scalar_lea.sflag [#allocation6], %s595
        %s597 = sand.u32 %s167, 1
        %s598 = smul.addr %s597, 8
        %s599 = scalar_lea.vmem [#allocation7], %s598
        // Predicated region
        $region67: #{tpu_custom_call.1} parent=61 // pred_check
          %p600 = pneg %p117
        $region68: #{tpu_custom_call.1} parent=61 // pred_check_branch
          %602 = sbr.rel (%p600) target = $region70
        $region69: #{tpu_custom_call.1} parent=61 // pred_region
          %s604 = ssub.s32 128, 128
          %605 = vsyncadd %s586, %s604
          %s606 = sadd.s32 %s28, %s29
          %s607 = smul.addr %s27, 4
          %s608 = sadd.s32 %s606, %s607
          %s609 = smul.addr %s608, 128
          %s610 = scalar_lea.hbm %s2, %s609
          %s612 = sshll.u32 %s589, 4
          %s613 = int_to_ptr.vmem [resolvable:$true] %s612
          %615 = dma.vmem_to_hbm [thread:$0]  %s613, 128, %s610, %s586
        $region70: #{tpu_custom_call.1} parent=61 // pred_fallthru
          _
        // Predicated region
        $region71: #{tpu_custom_call.1} parent=61 // pred_check
          %p616 = pneg %p147
        $region72: #{tpu_custom_call.1} parent=61 // pred_check_branch
          %618 = sbr.rel (%p616) target = $region74
        $region73: #{tpu_custom_call.1} parent=61 // pred_region
          %s620 = ssub.s32 128, 128
          %621 = vsyncadd %s591, %s620
          %s622 = sadd.s32 %s28, %s29
          %s623 = smul.addr %s27, 4
          %s624 = sadd.s32 %s622, %s623
          %s625 = smul.addr %s624, 128
          %s626 = scalar_lea.hbm %s3, %s625
          %s628 = sshll.u32 %s594, 4
          %s629 = int_to_ptr.vmem [resolvable:$true] %s628
          %631 = dma.vmem_to_hbm [thread:$0]  %s629, 128, %s626, %s591
        $region74: #{tpu_custom_call.1} parent=61 // pred_fallthru
          _
        // Predicated region
        $region75: #{tpu_custom_call.1} parent=61 // pred_check
          %p632 = pneg %p177
        $region76: #{tpu_custom_call.1} parent=61 // pred_check_branch
          %634 = sbr.rel (%p632) target = $region78
        $region77: #{tpu_custom_call.1} parent=61 // pred_region
          %s636 = ssub.s32 128, 128
          %637 = vsyncadd %s596, %s636
          %s638 = sadd.s32 %s28, %s29
          %s639 = smul.addr %s27, 4
          %s640 = sadd.s32 %s638, %s639
          %s641 = smul.addr %s640, 128
          %s642 = scalar_lea.hbm %s4, %s641
          %s644 = sshll.u32 %s599, 4
          %s645 = int_to_ptr.vmem [resolvable:$true] %s644
          %647 = dma.vmem_to_hbm [thread:$0]  %s645, 128, %s642, %s596
        $region78: #{tpu_custom_call.1} parent=61 // pred_fallthru
          _
      $region62: #{tpu_custom_call.1} parent=5 // pred_fallthru
        _
      %p648 = scmp.le.s32.totalorder 2, %s17
      // Predicated region
      $region79: #{tpu_custom_call.1} parent=5 // pred_check
        %p649 = pneg %p648
      $region80: #{tpu_custom_call.1} parent=5 // pred_check_branch
        %651 = sbr.rel (%p649) target = $region82
      $region81: #{tpu_custom_call.1} parent=5 // pred_region
        %s652 = ssub.s32 %s17, 2
        // Predicated region
        $region83: #{tpu_custom_call.1} parent=81 // pred_check
          %p653 = pneg %p123
        $region84: #{tpu_custom_call.1} parent=81 // pred_check_branch
          %655 = sbr.rel (%p653) target = $region86
        $region85: #{tpu_custom_call.1} parent=81 // pred_region
          %s656 = sand.u32 %s108, 1
          %s657 = scalar_lea.sflag [#allocation4], %s656
          %s658 = sand.u32 %s108, 1
          %s659 = smul.addr %s658, 8
          %s660 = scalar_lea.vmem [#allocation3], %s659
          %661 = dma.done %s657, 128
        $region86: #{tpu_custom_call.1} parent=81 // pred_fallthru
          _
        // Predicated region
        $region87: #{tpu_custom_call.1} parent=81 // pred_check
          %p662 = pneg %p153
        $region88: #{tpu_custom_call.1} parent=81 // pred_check_branch
          %664 = sbr.rel (%p662) target = $region90
        $region89: #{tpu_custom_call.1} parent=81 // pred_region
          %s665 = sand.u32 %s23, 1
          %s666 = scalar_lea.sflag [#allocation6], %s665
          %s667 = sand.u32 %s138, 1
          %s668 = smul.addr %s667, 8
          %s669 = scalar_lea.vmem [#allocation5], %s668
          %670 = dma.done %s666, 128
        $region90: #{tpu_custom_call.1} parent=81 // pred_fallthru
          _
        // Predicated region
        $region91: #{tpu_custom_call.1} parent=81 // pred_check
          %p671 = pneg %p183
        $region92: #{tpu_custom_call.1} parent=81 // pred_check_branch
          %673 = sbr.rel (%p671) target = $region94
        $region93: #{tpu_custom_call.1} parent=81 // pred_region
          %s674 = sand.u32 %s23, 1
          %s675 = scalar_lea.sflag [#allocation6], %s674
          %s676 = sand.u32 %s168, 1
          %s677 = smul.addr %s676, 8
          %s678 = scalar_lea.vmem [#allocation7], %s677
          %679 = dma.done %s675, 128
        $region94: #{tpu_custom_call.1} parent=81 // pred_fallthru
          _
      $region82: #{tpu_custom_call.1} parent=5 // pred_fallthru
        _
    $region6: #{tpu_custom_call.1} parent=1 // loop_footer
      %s21 = sadd.s32 1, %s17
    $region7: #{tpu_custom_call.1} parent=1 // loop_footer_branch
      %16 = sbr.rel target = $region3
    $region8: #{tpu_custom_call.1} parent=1 // loop_exit
      _
    %680 = vsyncpa [#allocation4], 1
    %s681 = scalar_lea.sflag [#allocation4], 1
    %682 = vsyncpa %s681, 1
    %683 = vsyncpa [#allocation6], 1
    %s684 = scalar_lea.sflag [#allocation6], 1
    %685 = vsyncpa %s684, 1

</llo_original>
